<compile_context>
chip_gen: v6e
topology: v6e:2x2x1
jax: 0.10.0
libtpu: 0.0.40
codegen_flags: <defaults>
</compile_context>

<pallas_src>
import jax
import jax.numpy as jnp
from jax.experimental import pallas as pl
from jax.experimental.pallas import tpu as pltpu


def fused_linear_kernel(x_ref, w_ref, b_ref, o_ref):
    # One MXU push (f32 accumulation) + one VPU broadcast-add.
    y = jnp.dot(x_ref[...], w_ref[...], preferred_element_type=jnp.float32)
    o_ref[...] = (y + b_ref[...]).astype(o_ref.dtype)


def prepare_params(w1, b1, w2, b2):
    """One-time parameter prep (outside the hot path).

    w1: [2*out, in], b1: [2*out], w2: [out, 2*in], b2: [out]
    Returns W_fused: [in, out] and b_fused: [1, out] (2-D, lane-major for TPU).
    """
    w_fused = w1.T @ w2.T                      # [in, out]
    b_fused = (b1 @ w2.T + b2).reshape(1, -1)  # [1, out]
    return w_fused, b_fused


@jax.jit
def model_forward(x, w_fused, b_fused):
    """x: [B, in], w_fused: [in, out], b_fused: [1, out] -> y: [B, out]."""
    B, in_f = x.shape
    out_f = w_fused.shape[1]

    # Batch-only grid: a single step for small batches (grid == (1,), no extra
    # per-step overhead); 512-row blocks for large batches so the software
    # pipeline is used and the "parallel" axis shards across v7x's two TCs.
    tb = min(B, 512)
    grid = (pl.cdiv(B, tb),)

    # Tiny-op hint so XLA schedules/overlaps the custom call correctly.
    cost = pl.CostEstimate(
        flops=2 * B * in_f * out_f,
        transcendentals=0,
        bytes_accessed=(x.size + w_fused.size + b_fused.size + B * out_f) * 4,
    )

    return pl.pallas_call(
        fused_linear_kernel,
        out_shape=jax.ShapeDtypeStruct((B, out_f), x.dtype),
        grid=grid,
        in_specs=[
            pl.BlockSpec((tb, in_f), lambda i: (i, 0)),      # x: tiled over batch
            pl.BlockSpec((in_f, out_f), lambda i: (0, 0)),   # fused weight: resident
            pl.BlockSpec((1, out_f), lambda i: (0, 0)),      # fused bias: resident
        ],
        out_specs=pl.BlockSpec((tb, out_f), lambda i: (i, 0)),
        compiler_params=pltpu.CompilerParams(
            dimension_semantics=("parallel",),
        ),
        cost_estimate=cost,
    )(x, w_fused, b_fused)
    # TODO(synk): if out_f stays < 128 at large batch, pad the output lane dim to
    # 128 (and fuse the slice into a downstream consumer) to avoid masked vst.msk
    # partial stores; at out_f=32 / B=8 the absolute win is negligible.


if __name__ == "__main__":
    input_size = 32
    output_size = 32  # must equal input_size for the original forward to be shape-valid
    batch = 8

    key = jax.random.PRNGKey(0)
    kx, kw1, kb1, kw2, kb2 = jax.random.split(key, 5)

    # Deterministic PyTorch-style init: U(-1/sqrt(fan_in), 1/sqrt(fan_in))
    bound1 = 1.0 / jnp.sqrt(jnp.float32(input_size))
    bound2 = 1.0 / jnp.sqrt(jnp.float32(input_size * 2))
    w1 = jax.random.uniform(kw1, (output_size * 2, input_size),
                            minval=-bound1, maxval=bound1, dtype=jnp.float32)
    b1 = jax.random.uniform(kb1, (output_size * 2,),
                            minval=-bound1, maxval=bound1, dtype=jnp.float32)
    w2 = jax.random.uniform(kw2, (output_size, input_size * 2),
                            minval=-bound2, maxval=bound2, dtype=jnp.float32)
    b2 = jax.random.uniform(kb2, (output_size,),
                            minval=-bound2, maxval=bound2, dtype=jnp.float32)

    x = jax.random.normal(kx, (batch, input_size), dtype=jnp.float32)

    # One-time param prep (affine fusion + layout), kept out of the hot path.
    w_fused, b_fused = prepare_params(w1, b1, w2, b2)
    jax.block_until_ready((w_fused, b_fused))

    y = model_forward(x, w_fused, b_fused)
    y = jax.block_until_ready(y)

    # Pure-JAX reference of the ORIGINAL two-layer forward.
    ref = (x @ w1.T + b1) @ w2.T + b2
    assert y.shape == (batch, output_size)
    assert jnp.allclose(y, ref, atol=1e-5, rtol=1e-5), "mismatch vs reference"

    print("KERNEL_OK")
</pallas_src>

<mosaic_0001>
module attributes {stable_mosaic.version = 11 : i64} {
  func.func @fused_linear_kernel(%arg0: i32, %arg1: memref<8x32xf32, #tpu.memory_space<vmem>>, %arg2: memref<32x32xf32, #tpu.memory_space<vmem>>, %arg3: memref<1x32xf32, #tpu.memory_space<vmem>>, %arg4: memref<8x32xf32, #tpu.memory_space<vmem>>) attributes {dimension_semantics = [#tpu.dimension_semantics<parallel>], iteration_bounds = array<i64: 1>, scalar_prefetch = 0 : i64, scratch_operands = 0 : i64, tpu.core_type = #tpu.core_type<tc>, window_params = [{transform_indices = @transform_0, window_bounds = array<i64: 8, 32>}, {pipeline_mode = #tpu.pipeline_mode<synchronous>, transform_indices = @transform_1, window_bounds = array<i64: 32, 32>}, {pipeline_mode = #tpu.pipeline_mode<synchronous>, transform_indices = @transform_2, window_bounds = array<i64: 1, 32>}, {transform_indices = @transform_3, window_bounds = array<i64: 8, 32>}]} {
    %c0 = arith.constant 0 : index
    %c0_0 = arith.constant 0 : index
    %0 = vector.load %arg1[%c0, %c0_0] : memref<8x32xf32, #tpu.memory_space<vmem>>, vector<8x32xf32>
    %c0_1 = arith.constant 0 : index
    %c0_2 = arith.constant 0 : index
    %1 = vector.load %arg2[%c0_1, %c0_2] : memref<32x32xf32, #tpu.memory_space<vmem>>, vector<32x32xf32>
    %cst = arith.constant dense<0.000000e+00> : vector<8x32xf32>
    %2 = tpu.matmul %0, %1, %cst {dimension_numbers = #tpu.dot_dimension_numbers<[1], [0], [0], [1], [0, 0, 1, 1], [], []>} : vector<8x32xf32>, vector<32x32xf32>, vector<8x32xf32> -> vector<8x32xf32>
    %c0_3 = arith.constant 0 : index
    %c0_4 = arith.constant 0 : index
    %3 = vector.load %arg3[%c0_3, %c0_4] : memref<1x32xf32, #tpu.memory_space<vmem>>, vector<1x32xf32>
    %4 = vector.broadcast %3 : vector<1x32xf32> to vector<8x32xf32>
    %5 = arith.addf %2, %4 : vector<8x32xf32>
    %c0_5 = arith.constant 0 : index
    %c0_6 = arith.constant 0 : index
    %6 = vector.load %arg4[%c0_5, %c0_6] : memref<8x32xf32, #tpu.memory_space<vmem>>, vector<8x32xf32>
    tpu.vector_store %arg4[%c0_5, %c0_6], %5 {strides = array<i32>} : memref<8x32xf32, #tpu.memory_space<vmem>>, vector<8x32xf32>,
    return
  }
  func.func @transform_0(%arg0: i32) -> (i32, i32) {
    %c0_i32 = arith.constant 0 : i32
    %c0_i32_0 = arith.constant 0 : i32
    return %arg0, %c0_i32 : i32, i32
  }
  func.func @transform_1(%arg0: i32) -> (i32, i32) {
    %c0_i32 = arith.constant 0 : i32
    %c0_i32_0 = arith.constant 0 : i32
    %c0_i32_1 = arith.constant 0 : i32
    return %c0_i32, %c0_i32_0 : i32, i32
  }
  func.func @transform_2(%arg0: i32) -> (i32, i32) {
    %c0_i32 = arith.constant 0 : i32
    %c0_i32_0 = arith.constant 0 : i32
    %c0_i32_1 = arith.constant 0 : i32
    return %c0_i32, %c0_i32_0 : i32, i32
  }
  func.func @transform_3(%arg0: i32) -> (i32, i32) {
    %c0_i32 = arith.constant 0 : i32
    %c0_i32_0 = arith.constant 0 : i32
    return %arg0, %c0_i32 : i32, i32
  }
}

</mosaic_0001>

<llo_original>
// kernel: model_forward.1
$region0: #{model_forward.1}
  #allocation0 [shape = 'u32[]', space=smem, size = 0x4, offset = 0x4, fixed_abs, tag = 'smem constant byte address 0x4 - core index']
  #allocation1 [shape = 'u32[144,128]{1,0:T(1,128)}', space=vmem, size = 0x12000, scoped, tag = 'internal scratch']
  %s0 = inlined_call_operand.hbm [shape: f32[8,32], index: 0, kind: input, shape index: {}]
  %s1 = inlined_call_operand.hbm [shape: f32[32,32], index: 1, kind: input, shape index: {}]
  %s2 = inlined_call_operand.vmem [shape: f32[1,32], index: 2, kind: input, shape index: {}]
  %s3 = inlined_call_operand.hbm [shape: f32[8,32], index: 3, kind: output, shape index: {}]
  %s4 = sld [smem:[#allocation0]]
  $region30: #{model_forward.1} parent=0
    _
  %s6 = ssub.s32 1, %s4
  %s7 = scalar_select 0, %s6, %s4
  $region1: #{model_forward.1} parent=0
    #allocation2 [shape = 'u8[4096]{0}', space=vmem, size = 0x1000, scoped, tag = 'input window, operand 0, single buffered']
    #allocation3 [shape = 's32[1]{0}', space=sflag, size = 0x4, scoped, tag = 'scoped memory for model_forward.1']
    #allocation4 [shape = 's32[1]{0}', space=sflag, size = 0x4, scoped, tag = 'scoped memory for model_forward.1']
    #allocation5 [shape = 'u8[16384]{0}', space=vmem, size = 0x4000, scoped, tag = 'input window, operand 1, single buffered']
    #allocation6 [shape = 's32[1]{0}', space=sflag, size = 0x4, scoped, tag = 'scoped memory for model_forward.1']
    #allocation7 [shape = 'u8[4096]{0}', space=vmem, size = 0x1000, scoped, tag = 'output window, operand 0, single buffered']
    %8 = vsyncpa [#allocation3], 0
    %9 = vsyncpa [#allocation6], 0
    %10 = vsyncpa [#allocation4], 0
    // Predicated region
    $region2: #{model_forward.1} parent=1 // pred_check
      _
    $region3: #{model_forward.1} parent=1 // pred_check_branch
      %12 = sbr.rel (0) target = $region5
    $region4: #{model_forward.1} parent=1 // pred_region
      %s14 = ssub.s32 128, 128
      %15 = vsyncadd [#allocation3], %s14
      %s17 = sshll.u32 [#allocation2], 4
      %s18 = int_to_ptr.vmem [resolvable:$true] %s17
      %20 = dma.hbm_to_vmem [thread:$0]  %s0, 128, %s18, [#allocation3]
    $region5: #{model_forward.1} parent=1 // pred_fallthru
      _
    // Predicated region
    $region6: #{model_forward.1} parent=1 // pred_check
      _
    $region7: #{model_forward.1} parent=1 // pred_check_branch
      %22 = sbr.rel (0) target = $region9
    $region8: #{model_forward.1} parent=1 // pred_region
      %s24 = ssub.s32 512, 512
      %25 = vsyncadd [#allocation6], %s24
      %s26 = sshll.u32 [#allocation5], 4
      %s27 = int_to_ptr.vmem [resolvable:$true] %s26
      %32 = dma.hbm_to_vmem [thread:$0]  %s1, 512, %s27, [#allocation6], 128, 128, 8
    $region9: #{model_forward.1} parent=1 // pred_fallthru
      _
    // Predicated region
    $region10: #{model_forward.1} parent=1 // pred_check
      _
    $region11: #{model_forward.1} parent=1 // pred_check_branch
      %34 = sbr.rel (0) target = $region13
    $region12: #{model_forward.1} parent=1 // pred_region
      _
    $region13: #{model_forward.1} parent=1 // pred_fallthru
      _
    // Predicated region
    $region14: #{model_forward.1} parent=1 // pred_check
      _
    $region15: #{model_forward.1} parent=1 // pred_check_branch
      %36 = sbr.rel (0) target = $region17
    $region16: #{model_forward.1} parent=1 // pred_region
      %37 = dma.done [#allocation3], 128
    $region17: #{model_forward.1} parent=1 // pred_fallthru
      _
    // Predicated region
    $region18: #{model_forward.1} parent=1 // pred_check
      _
    $region19: #{model_forward.1} parent=1 // pred_check_branch
      %39 = sbr.rel (0) target = $region21
    $region20: #{model_forward.1} parent=1 // pred_region
      %40 = dma.done [#allocation6], 512
    $region21: #{model_forward.1} parent=1 // pred_fallthru
      _
    %v41 = vld [vmem:[#allocation2] sm:$0xff]
    %v42 = vld [vmem:[#allocation5] sm:$0xff]
    %v43 = vld [vmem:[#allocation5 + $0x8] sm:$0xff]
    %v44 = vld [vmem:[#allocation5 + $0x10] sm:$0xff]
    %v45 = vld [vmem:[#allocation5 + $0x18] sm:$0xff]
    %v46 = vld [vmem:[%s2] sm:$0x1]
    %v48 = vlaneseq
    %v49 = vshrl.u32 %v48, 7
    %v50 = vsub.s32 0, %v49
    %v51 = vrot.slane %v46, %v50
    %vm53 = vcmask 261120
    %v55 = vsel %vm53, %v41, 0
    %57 = vmatprep.subr.mxu0 0.0
    %58 = vmatpush1.msra.mxu0 0.0
    %59 = vmatprep.subr.mxu0 0.0
    %60 = vmatpush1.msra.mxu0 0.0
    %61 = vmatprep.subr.mxu0 0.0
    %62 = vmatpush1.msra.mxu0 0.0
    %63 = vmatprep.subr.mxu0 0.0
    %64 = vmatpush1.msra.mxu0 0.0
    %65 = vmatprep.subr.mxu0 0.0
    %66 = vmatpush1.msra.mxu0 0.0
    %67 = vmatprep.subr.mxu0 0.0
    %68 = vmatpush1.msra.mxu0 0.0
    %69 = vmatprep.subr.mxu0 0.0
    %70 = vmatpush1.msra.mxu0 0.0
    %71 = vmatprep.subr.mxu0 0.0
    %72 = vmatpush1.msra.mxu0 0.0
    %73 = vmatprep.subr.mxu0 0.0
    %74 = vmatpush1.msra.mxu0 0.0
    %75 = vmatprep.subr.mxu0 0.0
    %76 = vmatpush1.msra.mxu0 0.0
    %77 = vmatprep.subr.mxu0 0.0
    %78 = vmatpush1.msra.mxu0 0.0
    %79 = vmatprep.subr.mxu0 0.0
    %80 = vmatpush1.msra.mxu0 0.0
    %81 = vmatprep.subr.mxu0 0.0
    %82 = vmatpush1.msra.mxu0 %v45
    %83 = vmatprep.subr.mxu0 0.0
    %84 = vmatpush1.msra.mxu0 %v44
    %85 = vmatprep.subr.mxu0 0.0
    %86 = vmatpush1.msra.mxu0 %v43
    %87 = vmatprep.subr.mxu0 0.0
    %88 = vmatpush1.msra.mxu0 %v42
    %89 = vmatprep.subr.mxu0 0.0
    %90 = vmatpush2.msra.mxu0 0.0
    %91 = vmatprep.subr.mxu0 0.0
    %92 = vmatpush2.msra.mxu0 0.0
    %93 = vmatprep.subr.mxu0 0.0
    %94 = vmatpush2.msra.mxu0 0.0
    %95 = vmatprep.subr.mxu0 0.0
    %96 = vmatpush2.msra.mxu0 0.0
    %97 = vmatprep.subr.mxu0 0.0
    %98 = vmatpush2.msra.mxu0 0.0
    %99 = vmatprep.subr.mxu0 0.0
    %100 = vmatpush2.msra.mxu0 0.0
    %101 = vmatprep.subr.mxu0 0.0
    %102 = vmatpush2.msra.mxu0 0.0
    %103 = vmatprep.subr.mxu0 0.0
    %104 = vmatpush2.msra.mxu0 0.0
    %105 = vmatprep.subr.mxu0 0.0
    %106 = vmatpush2.msra.mxu0 0.0
    %107 = vmatprep.subr.mxu0 0.0
    %108 = vmatpush2.msra.mxu0 0.0
    %109 = vmatprep.subr.mxu0 0.0
    %110 = vmatpush2.msra.mxu0 0.0
    %111 = vmatprep.subr.mxu0 0.0
    %112 = vmatpush2.msra.mxu0 0.0
    %113 = vmatprep.subr.mxu0 0.0
    %114 = vmatpush2.msra.mxu0 0.0
    %115 = vmatprep.subr.mxu0 0.0
    %116 = vmatpush2.msra.mxu0 0.0
    %117 = vmatprep.subr.mxu0 0.0
    %118 = vmatpush2.msra.mxu0 0.0
    %119 = vmatprep.subr.mxu0 0.0
    %120 = vmatpush2.msra.mxu0 0.0
    %121 = vmatprep.mubr.f32.mxu0 0.0
    %122 = vmatmul.mubr.f32.gmra.mxu0 %v55
    %v123 = vpop.f32.mrf.mxu0
    %v124 = vadd.f32 %v51, %v123
    %v125 = vpop.f32.mrf.mxu0
    %126 = vdwg.mxu0
    %127 = vst.msk [vmem:[#allocation7] sm:$0xff] %vm53, %v124
    // Predicated region
    $region22: #{model_forward.1} parent=1 // pred_check
      _
    $region23: #{model_forward.1} parent=1 // pred_check_branch
      %129 = sbr.rel (0) target = $region25
    $region24: #{model_forward.1} parent=1 // pred_region
      %s131 = ssub.s32 128, 128
      %132 = vsyncadd [#allocation4], %s131
      %s134 = sshll.u32 [#allocation7], 4
      %s135 = int_to_ptr.vmem [resolvable:$true] %s134
      %137 = dma.vmem_to_hbm [thread:$0]  %s135, 128, %s3, [#allocation4]
    $region25: #{model_forward.1} parent=1 // pred_fallthru
      _
    // Predicated region
    $region26: #{model_forward.1} parent=1 // pred_check
      _
    $region27: #{model_forward.1} parent=1 // pred_check_branch
      %139 = sbr.rel (0) target = $region29
    $region28: #{model_forward.1} parent=1 // pred_region
      %140 = dma.done [#allocation4], 128
    $region29: #{model_forward.1} parent=1 // pred_fallthru
      _
    %141 = vsyncpa [#allocation3], 1
    %142 = vsyncpa [#allocation6], 1
    %143 = vsyncpa [#allocation4], 1

</llo_original>
